<compile_context>
chip_gen: v7x
topology: tpu7x:2x2x1
jax: 0.10.0
libtpu: 0.0.40
codegen_flags: <defaults>
</compile_context>

<pallas_src>
import jax
import jax.numpy as jnp
from jax.experimental import pallas as pl
from jax.experimental.pallas import tpu as pltpu


def _round_up(x: int, m: int) -> int:
    return ((x + m - 1) // m) * m


def _make_fused_kernel(n_inputs: int, compute_dtype):
    """Kernel over one (tm, tn) output tile with all W slabs VMEM-resident."""

    def kernel(*refs):
        x_refs = refs[:n_inputs]
        w_refs = refs[n_inputs:2 * n_inputs]
        b_ref = refs[2 * n_inputs]
        o_ref = refs[2 * n_inputs + 1]

        acc = None
        for x_ref, w_ref in zip(x_refs, w_refs):
            x = x_ref[...]
            if compute_dtype is not None and x.dtype != compute_dtype:
                # Operand cast folded into the kernel (VPU) -> no extra HBM
                # pass over the activations in the wrapper.
                x = x.astype(compute_dtype)
            part = jnp.dot(x, w_ref[...], preferred_element_type=jnp.float32)
            acc = part if acc is None else acc + part
        # Bias added exactly once per output tile; output_activation=None
        # -> Identity.
        o_ref[...] = (acc + b_ref[...]).astype(o_ref.dtype)

    return kernel


def prepare_mlp_params(w, b, input_dims, *, compute_dtype=jnp.bfloat16):
    """One-time parameter prep (keep OUT of the hot forward path).

    Splits W row-wise into one slab per input (so the forward never has to
    materialize a concatenated activation tensor) and casts the slabs to the
    MXU operand dtype.  Bias stays f32 (the accumulator is f32).
    """
    din = int(sum(input_dims))
    assert w.shape[0] == din, f"W rows {w.shape[0]} != sum(input_dims) {din}"
    w_slabs, off = [], 0
    for d in input_dims:
        slab = w[off:off + d, :]
        if compute_dtype is not None:
            slab = slab.astype(compute_dtype)
        w_slabs.append(slab)
        off += d
    b2d = b.reshape(1, -1).astype(jnp.float32)
    return tuple(w_slabs), b2d


def mlp_net_forward(inputs, w_slabs, b2d, *, compute_dtype=jnp.bfloat16,
                    tm_pref=512, vmem_budget_bytes=40 * 1024 * 1024):
    """MLPNet.forward: (implicit concat) -> Linear -> Identity.

    inputs:  a single array or list of arrays, each [..., d_i].
    w_slabs: per-input weight slabs [d_i, Dout] from prepare_mlp_params.
    b2d:     bias reshaped to [1, Dout], f32.
    """
    if not isinstance(inputs, (list, tuple)):
        inputs = [inputs]
    assert len(inputs) == len(w_slabs), "one weight slab per input required"

    lead = inputs[0].shape[:-1]
    out_dtype = inputs[0].dtype
    xs = [x.reshape(-1, x.shape[-1]) for x in inputs]
    M = xs[0].shape[0]
    dims = [x.shape[-1] for x in xs]
    Dout = w_slabs[0].shape[1]

    # N tiling: MLPNet outputs are small -> keep the full Dout resident
    # (exact-width stores, no padded slab, no trailing slice).
    tn = Dout if Dout <= 1024 else 512
    nn = pl.cdiv(Dout, tn)

    # M tile: as big as VMEM allows, but keep >= 2 tiles when the batch
    # allows it so both v7x TensorCores get work.
    tm = min(tm_pref, _round_up(M, 8))
    if M > 8 and pl.cdiv(M, tm) < 2:
        tm = _round_up(pl.cdiv(M, 2), 8)

    w_bytes = sum(s.dtype.itemsize * s.shape[0] * tn for s in w_slabs)
    x_item = out_dtype.itemsize

    def working_set(tm_):
        # resident W + bias + double-buffered x tiles + double-buffered out.
        return (w_bytes + 4 * tn
                + 2 * sum(tm_ * d * x_item for d in dims)
                + 2 * tm_ * tn * out_dtype.itemsize)

    # TODO(synk): add a K-tiled fallback for weights too large for VMEM
    # residency (never the case for MLPNet-sized layers).
    assert working_set(8) <= vmem_budget_bytes, "weight does not fit in VMEM"
    while working_set(tm) > vmem_budget_bytes and tm > 8:
        tm = max(8, _round_up(tm // 2, 8))

    nm = pl.cdiv(M, tm)
    grid = (nn, nm)  # N outer so W slabs stay resident across the M sweep.

    in_specs = (
        [pl.BlockSpec((tm, d), lambda j, i: (i, 0)) for d in dims]            # x_i
        + [pl.BlockSpec((s.shape[0], tn), lambda j, i: (0, j)) for s in w_slabs]  # W_i (resident)
        + [pl.BlockSpec((1, tn), lambda j, i: (0, j))]                        # bias
    )
    out_spec = pl.BlockSpec((tm, tn), lambda j, i: (i, j))

    out2d = pl.pallas_call(
        _make_fused_kernel(len(xs), compute_dtype),
        out_shape=jax.ShapeDtypeStruct((M, Dout), out_dtype),
        grid_spec=pltpu.PrefetchScalarGridSpec(
            num_scalar_prefetch=0,
            grid=grid,
            in_specs=in_specs,
            out_specs=out_spec,
        ),
        compiler_params=pltpu.CompilerParams(
            dimension_semantics=("parallel", "parallel"),
            # v7x-safe scoped request (64 MiB/TC physical); far below the
            # 128 MiB of v5e/v6e as well.
            vmem_limit_bytes=48 * 1024 * 1024,
        ),
    )(*xs, *w_slabs, b2d)

    return out2d.reshape(*lead, Dout)


def _make_params(key, din, dout):
    k_w, k_b = jax.random.split(key)
    bound = 1.0 / (din ** 0.5)
    w = jax.random.uniform(k_w, (din, dout), jnp.float32, -bound, bound)
    b = jax.random.uniform(k_b, (dout,), jnp.float32, -bound, bound)
    return w, b


if __name__ == "__main__":
    key = jax.random.PRNGKey(0)

    # ---- Test 1: module-consistent tiny shapes ---------------------------
    # MLPNet(input_dims=[16, 16], output_dim=8): concat -> Linear(32, 8).
    k1, k2, kp = jax.random.split(key, 3)
    batch, input_dims, output_dim = 8, (16, 16), 8
    din = sum(input_dims)

    x_a = jax.random.normal(k1, (batch, input_dims[0]), dtype=jnp.float32)
    x_b = jax.random.normal(k2, (batch, input_dims[1]), dtype=jnp.float32)
    w, b = _make_params(kp, din, output_dim)
    ref = jnp.dot(jnp.concatenate([x_a, x_b], axis=-1), w,
                  precision=jax.lax.Precision.HIGHEST) + b

    w_slabs, b2d = prepare_mlp_params(w, b, input_dims)  # default bf16 operands
    out = jax.block_until_ready(mlp_net_forward([x_a, x_b], w_slabs, b2d))
    assert out.shape == (batch, output_dim)
    assert jnp.allclose(out, ref, atol=2e-2, rtol=2e-2), "small bf16 mismatch"

    # Single-tensor input path (torch.is_tensor branch of the module).
    w_slabs1, b2d1 = prepare_mlp_params(w, b, (din,))
    x_cat = jnp.concatenate([x_a, x_b], axis=-1)
    out1 = jax.block_until_ready(mlp_net_forward(x_cat, w_slabs1, b2d1))
    assert jnp.allclose(out1, ref, atol=2e-2, rtol=2e-2), "single-input mismatch"

    # ---- Test 2: larger shapes exercising M tiling / ragged M and Dout ---
    k3, k4, kp2 = jax.random.split(jax.random.PRNGKey(1), 3)
    batch2, dims2, dout2 = 384, (256, 384), 200   # Din=640, Dout=200 (not 128-aligned)
    din2 = sum(dims2)
    y_a = jax.random.normal(k3, (batch2, dims2[0]), dtype=jnp.float32)
    y_b = jax.random.normal(k4, (batch2, dims2[1]), dtype=jnp.float32)
    w2, b2 = _make_params(kp2, din2, dout2)
    ref2 = jnp.dot(jnp.concatenate([y_a, y_b], axis=-1), w2,
                   precision=jax.lax.Precision.HIGHEST) + b2

    # Default bf16 operands (v5e/v6e/v7x MXU-native), f32 accumulation.
    w2_bf, b2_2d = prepare_mlp_params(w2, b2, dims2)
    out2_bf16 = jax.block_until_ready(mlp_net_forward([y_a, y_b], w2_bf, b2_2d))
    assert out2_bf16.shape == (batch2, dout2)
    assert jnp.allclose(out2_bf16, ref2, atol=5e-2, rtol=5e-2), "bf16 mismatch"

    # Explicit f32 operand path (MXU default precision vs. HIGHEST reference).
    w2_f32, b2_2d_f32 = prepare_mlp_params(w2, b2, dims2, compute_dtype=jnp.float32)
    out2_f32 = jax.block_until_ready(
        mlp_net_forward([y_a, y_b], w2_f32, b2_2d_f32, compute_dtype=jnp.float32))
    assert out2_f32.shape == (batch2, dout2)
    assert jnp.allclose(out2_f32, ref2, atol=2e-2, rtol=2e-2), "f32 mismatch"

    print("KERNEL_OK")
</pallas_src>

<mosaic_0001>
module attributes {stable_mosaic.version = 11 : i64} {
  func.func @kernel(%arg0: i32, %arg1: i32, %arg2: memref<8x16xf32, #tpu.memory_space<vmem>>, %arg3: memref<8x16xf32, #tpu.memory_space<vmem>>, %arg4: memref<16x8xbf16, #tpu.memory_space<vmem>>, %arg5: memref<16x8xbf16, #tpu.memory_space<vmem>>, %arg6: memref<1x8xf32, #tpu.memory_space<vmem>>, %arg7: memref<8x8xf32, #tpu.memory_space<vmem>>) attributes {dimension_semantics = [#tpu.dimension_semantics<parallel>, #tpu.dimension_semantics<parallel>], iteration_bounds = array<i64: 1, 1>, scalar_prefetch = 0 : i64, scratch_operands = 0 : i64, tpu.core_type = #tpu.core_type<tc>, window_params = [{transform_indices = @transform_0, window_bounds = array<i64: 8, 16>}, {transform_indices = @transform_1, window_bounds = array<i64: 8, 16>}, {transform_indices = @transform_2, window_bounds = array<i64: 16, 8>}, {transform_indices = @transform_3, window_bounds = array<i64: 16, 8>}, {transform_indices = @transform_4, window_bounds = array<i64: 1, 8>}, {transform_indices = @transform_5, window_bounds = array<i64: 8, 8>}]} {
    %c0 = arith.constant 0 : index
    %c0_0 = arith.constant 0 : index
    %0 = vector.load %arg2[%c0, %c0_0] : memref<8x16xf32, #tpu.memory_space<vmem>>, vector<8x16xf32>
    %1 = arith.truncf %0 : vector<8x16xf32> to vector<8x16xbf16>
    %c0_1 = arith.constant 0 : index
    %c0_2 = arith.constant 0 : index
    %2 = vector.load %arg4[%c0_1, %c0_2] : memref<16x8xbf16, #tpu.memory_space<vmem>>, vector<16x8xbf16>
    %cst = arith.constant dense<0.000000e+00> : vector<8x8xf32>
    %3 = tpu.matmul %1, %2, %cst {dimension_numbers = #tpu.dot_dimension_numbers<[1], [0], [0], [1], [0, 0, 1, 1], [], []>} : vector<8x16xbf16>, vector<16x8xbf16>, vector<8x8xf32> -> vector<8x8xf32>
    %c0_3 = arith.constant 0 : index
    %c0_4 = arith.constant 0 : index
    %4 = vector.load %arg3[%c0_3, %c0_4] : memref<8x16xf32, #tpu.memory_space<vmem>>, vector<8x16xf32>
    %5 = arith.truncf %4 : vector<8x16xf32> to vector<8x16xbf16>
    %c0_5 = arith.constant 0 : index
    %c0_6 = arith.constant 0 : index
    %6 = vector.load %arg5[%c0_5, %c0_6] : memref<16x8xbf16, #tpu.memory_space<vmem>>, vector<16x8xbf16>
    %cst_7 = arith.constant dense<0.000000e+00> : vector<8x8xf32>
    %7 = tpu.matmul %5, %6, %cst_7 {dimension_numbers = #tpu.dot_dimension_numbers<[1], [0], [0], [1], [0, 0, 1, 1], [], []>} : vector<8x16xbf16>, vector<16x8xbf16>, vector<8x8xf32> -> vector<8x8xf32>
    %8 = arith.addf %3, %7 : vector<8x8xf32>
    %c0_8 = arith.constant 0 : index
    %c0_9 = arith.constant 0 : index
    %9 = vector.load %arg6[%c0_8, %c0_9] : memref<1x8xf32, #tpu.memory_space<vmem>>, vector<1x8xf32>
    %10 = vector.broadcast %9 : vector<1x8xf32> to vector<8x8xf32>
    %11 = arith.addf %8, %10 : vector<8x8xf32>
    %c0_10 = arith.constant 0 : index
    %c0_11 = arith.constant 0 : index
    %12 = vector.load %arg7[%c0_10, %c0_11] : memref<8x8xf32, #tpu.memory_space<vmem>>, vector<8x8xf32>
    tpu.vector_store %arg7[%c0_10, %c0_11], %11 {strides = array<i32>} : memref<8x8xf32, #tpu.memory_space<vmem>>, vector<8x8xf32>,
    return
  }
  func.func @transform_0(%arg0: i32, %arg1: i32) -> (i32, i32) {
    %c0_i32 = arith.constant 0 : i32
    %c0_i32_0 = arith.constant 0 : i32
    return %arg1, %c0_i32 : i32, i32
  }
  func.func @transform_1(%arg0: i32, %arg1: i32) -> (i32, i32) {
    %c0_i32 = arith.constant 0 : i32
    %c0_i32_0 = arith.constant 0 : i32
    return %arg1, %c0_i32 : i32, i32
  }
  func.func @transform_2(%arg0: i32, %arg1: i32) -> (i32, i32) {
    %c0_i32 = arith.constant 0 : i32
    %c0_i32_0 = arith.constant 0 : i32
    return %c0_i32, %arg0 : i32, i32
  }
  func.func @transform_3(%arg0: i32, %arg1: i32) -> (i32, i32) {
    %c0_i32 = arith.constant 0 : i32
    %c0_i32_0 = arith.constant 0 : i32
    return %c0_i32, %arg0 : i32, i32
  }
  func.func @transform_4(%arg0: i32, %arg1: i32) -> (i32, i32) {
    %c0_i32 = arith.constant 0 : i32
    %c0_i32_0 = arith.constant 0 : i32
    return %c0_i32, %arg0 : i32, i32
  }
  func.func @transform_5(%arg0: i32, %arg1: i32) -> (i32, i32) {
    %c0_i32 = arith.constant 0 : i32
    return %arg1, %arg0 : i32, i32
  }
}

</mosaic_0001>

<llo_original>
// kernel: tpu_custom_call.1
$region0: #{tpu_custom_call.1}
  #allocation0 [shape = 'u32[]', space=smem, size = 0x4, offset = 0x4, fixed_abs, tag = 'smem constant byte address 0x4 - core index']
  #allocation1 [shape = 'u32[144,128]{1,0:T(1,128)}', space=vmem, size = 0x12000, scoped, tag = 'internal scratch']
  %s0 = inlined_call_operand.vmem [shape: f32[8,16], index: 0, kind: input, shape index: {}]
  %s1 = inlined_call_operand.vmem [shape: f32[8,16], index: 1, kind: input, shape index: {}]
  %s2 = inlined_call_operand.vmem [shape: bf16[16,8], index: 2, kind: input, shape index: {}]
  %s3 = inlined_call_operand.vmem [shape: bf16[16,8], index: 3, kind: input, shape index: {}]
  %s4 = inlined_call_operand.vmem [shape: f32[1,8], index: 4, kind: input, shape index: {}]
  %s5 = inlined_call_operand.hbm [shape: f32[8,8], index: 5, kind: output, shape index: {}]
  %s6 = sld [smem:[#allocation0]]
  $region30: #{tpu_custom_call.1} parent=0
    _
  %s8 = ssub.s32 1, %s6
  %s9 = scalar_select 0, %s8, %s6
  $region1: #{tpu_custom_call.1} parent=0
    #allocation2 [shape = 'u8[4096]{0}', space=vmem, size = 0x1000, scoped, tag = 'output window, operand 0, single buffered']
    #allocation3 [shape = 's32[1]{0}', space=sflag, size = 0x4, scoped, tag = 'scoped memory for tpu_custom_call.1']
    %10 = vsyncpa [#allocation3], 0
    // Predicated region
    $region2: #{tpu_custom_call.1} parent=1 // pred_check
      _
    $region3: #{tpu_custom_call.1} parent=1 // pred_check_branch
      %12 = sbr.rel (0) target = $region5
    $region4: #{tpu_custom_call.1} parent=1 // pred_region
      _
    $region5: #{tpu_custom_call.1} parent=1 // pred_fallthru
      _
    // Predicated region
    $region6: #{tpu_custom_call.1} parent=1 // pred_check
      _
    $region7: #{tpu_custom_call.1} parent=1 // pred_check_branch
      %14 = sbr.rel (0) target = $region9
    $region8: #{tpu_custom_call.1} parent=1 // pred_region
      _
    $region9: #{tpu_custom_call.1} parent=1 // pred_fallthru
      _
    // Predicated region
    $region10: #{tpu_custom_call.1} parent=1 // pred_check
      _
    $region11: #{tpu_custom_call.1} parent=1 // pred_check_branch
      %16 = sbr.rel (0) target = $region13
    $region12: #{tpu_custom_call.1} parent=1 // pred_region
      _
    $region13: #{tpu_custom_call.1} parent=1 // pred_fallthru
      _
    // Predicated region
    $region14: #{tpu_custom_call.1} parent=1 // pred_check
      _
    $region15: #{tpu_custom_call.1} parent=1 // pred_check_branch
      %18 = sbr.rel (0) target = $region17
    $region16: #{tpu_custom_call.1} parent=1 // pred_region
      _
    $region17: #{tpu_custom_call.1} parent=1 // pred_fallthru
      _
    // Predicated region
    $region18: #{tpu_custom_call.1} parent=1 // pred_check
      _
    $region19: #{tpu_custom_call.1} parent=1 // pred_check_branch
      %20 = sbr.rel (0) target = $region21
    $region20: #{tpu_custom_call.1} parent=1 // pred_region
      _
    $region21: #{tpu_custom_call.1} parent=1 // pred_fallthru
      _
    %v22 = vld [vmem:[%s0] sm:$0xff]
    %v23 = vpack.c.bf16 %v22, %v22
    %v24 = vld [vmem:[%s2] sm:$0xf]
    %v25 = vld [vmem:[%s2 + $0x4] sm:$0xf]
    %v26 = vld [vmem:[%s1] sm:$0xff]
    %v27 = vpack.c.bf16 %v26, %v26
    %v28 = vld [vmem:[%s3] sm:$0xf]
    %v29 = vld [vmem:[%s3 + $0x4] sm:$0xf]
    %v32 = vunpack.c.l.b16 %v28
    %v33 = vunpack.c.l.b16 %v29
    %v34 = vpack.c.b16 %v33, %v32
    %vm36 = vcmask 130048
    %v38 = vsel %vm36, %v27, 0
    %40 = vmatprep.subr.bf16.mxu0 0
    %41 = vmatpush1.bf16.msra.mxu0 %v34
    %42 = vmatprep.subr.bf16.mxu0 0
    %43 = vmatpush1.bf16.msra.mxu0 0
    %44 = vmatprep.subr.bf16.mxu0 0
    %45 = vmatpush1.bf16.msra.mxu0 0
    %46 = vmatprep.subr.bf16.mxu0 0
    %47 = vmatpush1.bf16.msra.mxu0 0
    %48 = vmatprep.subr.bf16.mxu0 0
    %49 = vmatpush1.bf16.msra.mxu0 0
    %50 = vmatprep.subr.bf16.mxu0 0
    %51 = vmatpush1.bf16.msra.mxu0 0
    %52 = vmatprep.subr.bf16.mxu0 0
    %53 = vmatpush1.bf16.msra.mxu0 0
    %54 = vmatprep.subr.bf16.mxu0 0
    %55 = vmatpush1.bf16.msra.mxu0 0
    %56 = vmatprep.subr.bf16.mxu0 0
    %57 = vmatpush1.bf16.msra.mxu0 0
    %58 = vmatprep.subr.bf16.mxu0 0
    %59 = vmatpush1.bf16.msra.mxu0 0
    %60 = vmatprep.subr.bf16.mxu0 0
    %61 = vmatpush1.bf16.msra.mxu0 0
    %62 = vmatprep.subr.bf16.mxu0 0
    %63 = vmatpush1.bf16.msra.mxu0 0
    %64 = vmatprep.subr.bf16.mxu0 0
    %65 = vmatpush1.bf16.msra.mxu0 0
    %66 = vmatprep.subr.bf16.mxu0 0
    %67 = vmatpush1.bf16.msra.mxu0 0
    %68 = vmatprep.subr.bf16.mxu0 0
    %69 = vmatpush1.bf16.msra.mxu0 0
    %70 = vmatprep.subr.bf16.mxu0 0
    %71 = vmatpush1.bf16.msra.mxu0 0
    %72 = vmatprep.mubr.bf16.mxu0 0
    %73 = vmatmul.mubr.bf16.gmra.mrb[0].mxu0 %v38
    %v74 = vpop.f32.mrb[0].mxu0
    %v75 = vadd.f32 0.0, %v74
    %v76 = vpop.f32.mrb[0].mxu0
    %v77 = vpop.f32.mrb[0].mxu0
    %v78 = vpop.f32.mrb[0].mxu0
    %79 = vdwg.mxu0
    %v82 = vunpack.c.l.b16 %v24
    %v83 = vunpack.c.l.b16 %v25
    %v84 = vpack.c.b16 %v83, %v82
    %v87 = vsel %vm36, %v23, 0
    %89 = vmatprep.subr.bf16.mxu0 0
    %90 = vmatpush1.bf16.msra.mxu0 %v84
    %91 = vmatprep.subr.bf16.mxu0 0
    %92 = vmatpush1.bf16.msra.mxu0 0
    %93 = vmatprep.subr.bf16.mxu0 0
    %94 = vmatpush1.bf16.msra.mxu0 0
    %95 = vmatprep.subr.bf16.mxu0 0
    %96 = vmatpush1.bf16.msra.mxu0 0
    %97 = vmatprep.subr.bf16.mxu0 0
    %98 = vmatpush1.bf16.msra.mxu0 0
    %99 = vmatprep.subr.bf16.mxu0 0
    %100 = vmatpush1.bf16.msra.mxu0 0
    %101 = vmatprep.subr.bf16.mxu0 0
    %102 = vmatpush1.bf16.msra.mxu0 0
    %103 = vmatprep.subr.bf16.mxu0 0
    %104 = vmatpush1.bf16.msra.mxu0 0
    %105 = vmatprep.subr.bf16.mxu0 0
    %106 = vmatpush1.bf16.msra.mxu0 0
    %107 = vmatprep.subr.bf16.mxu0 0
    %108 = vmatpush1.bf16.msra.mxu0 0
    %109 = vmatprep.subr.bf16.mxu0 0
    %110 = vmatpush1.bf16.msra.mxu0 0
    %111 = vmatprep.subr.bf16.mxu0 0
    %112 = vmatpush1.bf16.msra.mxu0 0
    %113 = vmatprep.subr.bf16.mxu0 0
    %114 = vmatpush1.bf16.msra.mxu0 0
    %115 = vmatprep.subr.bf16.mxu0 0
    %116 = vmatpush1.bf16.msra.mxu0 0
    %117 = vmatprep.subr.bf16.mxu0 0
    %118 = vmatpush1.bf16.msra.mxu0 0
    %119 = vmatprep.subr.bf16.mxu0 0
    %120 = vmatpush1.bf16.msra.mxu0 0
    %121 = vmatprep.mubr.bf16.mxu0 0
    %122 = vmatmul.mubr.bf16.gmra.mrb[0].mxu0 %v87
    %v123 = vpop.f32.mrb[0].mxu0
    %v124 = vadd.f32 %v75, %v123
    %v125 = vpop.f32.mrb[0].mxu0
    %v126 = vpop.f32.mrb[0].mxu0
    %v127 = vpop.f32.mrb[0].mxu0
    %128 = vdwg.mxu0
    %v129 = vld [vmem:[%s4] sm:$0x1]
    %v131 = vlaneseq
    %v132 = vshrl.u32 %v131, 7
    %v133 = vsub.s32 0, %v132
    %v134 = vrot.slane %v129, %v133
    %v136 = vadd.f32 %v124, %v134
    %vm137 = vcmask 64512
    %138 = vst.msk [vmem:[#allocation2] sm:$0xff] %vm137, %v136
    // Predicated region
    $region22: #{tpu_custom_call.1} parent=1 // pred_check
      _
    $region23: #{tpu_custom_call.1} parent=1 // pred_check_branch
      %140 = sbr.rel (0) target = $region25
    $region24: #{tpu_custom_call.1} parent=1 // pred_region
      %s142 = ssub.s32 128, 128
      %143 = vsyncadd [#allocation3], %s142
      %s145 = sshll.u32 [#allocation2], 4
      %s146 = int_to_ptr.vmem [resolvable:$true] %s145
      %148 = dma.vmem_to_hbm [thread:$0]  %s146, 128, %s5, [#allocation3]
    $region25: #{tpu_custom_call.1} parent=1 // pred_fallthru
      _
    // Predicated region
    $region26: #{tpu_custom_call.1} parent=1 // pred_check
      _
    $region27: #{tpu_custom_call.1} parent=1 // pred_check_branch
      %150 = sbr.rel (0) target = $region29
    $region28: #{tpu_custom_call.1} parent=1 // pred_region
      %151 = dma.done [#allocation3], 128
    $region29: #{tpu_custom_call.1} parent=1 // pred_fallthru
      _
    %152 = vsyncpa [#allocation3], 1

</llo_original>
